<compile_context>
chip_gen: v7x
topology: tpu7x:2x2x1
jax: 0.10.0
libtpu: 0.0.40
codegen_flags: <defaults>
</compile_context>

<pallas_src>
import math

import jax
import jax.numpy as jnp
import numpy as np
from jax.experimental import pallas as pl
from jax.experimental.pallas import tpu as pltpu


def _activation(y, activation):
    # Static (trace-time) dispatch; matches activation_func() options.
    if activation == "identity":
        return y
    if activation == "relu":
        return jnp.maximum(y, 0.0)
    if activation == "elu":
        return jnp.where(y > 0, y, jnp.expm1(y))
    if activation == "selu":
        return jax.nn.selu(y)
    if activation == "gelu":
        return jax.nn.gelu(y, approximate=False)
    if activation == "mish":
        return y * jnp.tanh(jax.nn.softplus(y))
    if activation == "swish":
        return y * jax.nn.sigmoid(y)
    if activation == "hardswish":
        return y * jnp.clip(y + 3.0, 0.0, 6.0) / 6.0
    raise ValueError(f"invalid activation: {activation}")


def make_conv_block_kernel(H, W, K, B, zpad, activation):
    p = (K - 1) // 2
    HW = H * W

    def kernel(x_ref, w_ref, colm_ref, m_ref, scale_ref, shift_ref, o_ref,
               xsh_ref, patch_ref):
        # x_ref:     (B, Cin, H*W)        bf16, flattened NCHW image (lane-dense)
        # w_ref:     (Cout, K*K*Cin)      bf16, tap-major ((kh*K+kw)*Cin + c)
        # colm_ref:  (K, H*W)             bf16 {0,1} per-kw column-wrap mask
        # m_ref:     (B, 1, H*W)          f32 spatial mask
        # scale_ref: (Cout, 1)            f32 = gamma / sqrt(running_var + eps)
        # shift_ref: (Cout, 1)            f32 = beta - running_mean * scale
        # o_ref:     (B, Cout, H*W)       output, spatial axis lane-dense
        # xsh_ref:   (B, Cin, H*W+2*zpad) bf16 scratch, zero lane borders
        # patch_ref: (K*K*Cin, B*H*W)     bf16 scratch, im2col matrix
        Cin = x_ref.shape[1]
        Cout = o_ref.shape[1]

        # Zero only the small lane borders (O(zpad) lanes, HW-independent),
        # every step (multi-TensorCore safe); the interior is overwritten.
        if zpad > 0:
            zeros_b = jnp.zeros((B, Cin, zpad), xsh_ref.dtype)
            xsh_ref[:, :, :zpad] = zeros_b
            xsh_ref[:, :, zpad + HW:] = zeros_b
        xsh_ref[:, :, zpad:zpad + HW] = x_ref[...]

        # Assemble the bf16 im2col patch.  Taps with kw == p never leave the
        # (zero-bordered) image row, so they need no mask; shifted columns get
        # the tiny {0,1} column-wrap mask applied at assembly time.
        for b in range(B):
            for kh in range(K):
                for kw in range(K):
                    t = kh * K + kw
                    off = zpad + (kh - p) * W + (kw - p)   # static lane offset
                    sl = xsh_ref[b, :, off:off + HW]        # (Cin, HW)
                    if kw != p:
                        sl = sl * colm_ref[kw:kw + 1, :]    # exact ({0,1})
                    patch_ref[t * Cin:(t + 1) * Cin,
                              b * HW:(b + 1) * HW] = sl

        # Single merged MXU matmul, bf16 operands with f32 accumulation.
        acc = jnp.dot(w_ref[...], patch_ref[...],
                      preferred_element_type=jnp.float32)   # (Cout, B*H*W)

        # Post-matmul VPU math in f32; broadcasts hoisted out of the b-loop.
        scale = jnp.broadcast_to(scale_ref[...], (Cout, HW))
        shift = jnp.broadcast_to(shift_ref[...], (Cout, HW))
        for b in range(B):
            y = acc[:, b * HW:(b + 1) * HW]   # 128-aligned lane slice
            m = m_ref[b]                      # (1, H*W)
            y = y * m                         # conv(x) * mask
            y = y * scale + shift             # BatchNorm2d (eval, folded affine)
            y = y * m                         # bn(x) * mask (mask may be non-binary)
            y = _activation(y, activation)
            o_ref[b] = y.astype(o_ref.dtype)  # (Cout, H*W) full-lane store

    return kernel


def _physical_vmem_bytes():
    try:
        info = pltpu.get_tpu_info()
        v = getattr(info, "vmem_capacity_bytes", None)
        if v:
            return int(v)
    except Exception:
        pass
    return 64 * 1024 * 1024   # most restrictive case (v7x per-TensorCore)


def conv_block_forward(x_nchw, mask_nchw, weight_oihw, scale, shift,
                       activation="relu", batch_tile=None,
                       mxu_dtype=jnp.bfloat16, out_dtype=jnp.float32):
    """Pallas ConvBlock.forward.  Inputs in PyTorch NCHW / OIHW layouts."""
    N, Cin, H, W = x_nchw.shape
    Cout, Cin2, K, K2 = weight_oihw.shape
    assert Cin2 == Cin and K2 == K
    # TODO(synk): even kernel sizes would need asymmetric 'same' padding.
    assert K % 2 == 1, "only odd kernel sizes supported"
    p = (K - 1) // 2
    HW = H * W
    KKC = K * K * Cin
    S = p * (W + 1)                                   # max |flattened tap offset|
    zpad = ((S + 127) // 128) * 128 if S > 0 else 0   # 128-aligned staging offset

    # Odd Cin would put packed-bf16 patch stores at odd sublane offsets;
    # fall back to f32 streaming in that (rare) case for robustness.
    if Cin % 2 == 1 and jnp.dtype(mxu_dtype).itemsize == 2:
        mxu_dtype = jnp.float32
    elem = jnp.dtype(mxu_dtype).itemsize

    phys_vmem = _physical_vmem_bytes()
    vmem_budget = int(phys_vmem * 0.6)       # leave the compiler headroom

    def est_vmem(B):
        f4 = 4
        return (B * Cin * (HW + 2 * zpad) * elem        # xsh scratch
                + KKC * B * HW * elem                   # patch scratch
                + 2 * B * Cin * HW * elem               # x  (double-buffered)
                + 2 * B * HW * f4                       # mask
                + 2 * B * Cout * HW * f4                # out
                + 2 * Cout * KKC * elem                 # weight
                + 2 * K * HW * elem                     # column mask
                + 4 * Cout * f4)                        # scale/shift

    if batch_tile is None:
        divisors = [d for d in range(1, N + 1) if N % d == 0]
        # Prefer >=2 grid steps (keeps both v7x TensorCores busy) while taking
        # the largest batch tile that fits the VMEM budget.
        cands = [d for d in divisors
                 if d <= 8 and est_vmem(d) <= vmem_budget and N // d >= 2]
        if not cands:
            cands = [d for d in divisors if d <= 8 and est_vmem(d) <= vmem_budget]
        if not cands:
            cands = [1]
        batch_tile = max(cands)
    B = batch_tile
    assert N % B == 0

    # Glue: free contiguous reshapes (no NCHW<->NHWC transpose, no HBM pad);
    # x streamed in the MXU dtype, only the tiny weight is repacked.
    x2 = x_nchw.reshape(N, Cin, HW).astype(mxu_dtype)
    m2 = mask_nchw.reshape(N, 1, HW).astype(jnp.float32)
    w2 = jnp.transpose(weight_oihw, (0, 2, 3, 1)).reshape(Cout, KKC)
    w2 = w2.astype(mxu_dtype)
    scale2 = jnp.asarray(scale, jnp.float32).reshape(Cout, 1)
    shift2 = jnp.asarray(shift, jnp.float32).reshape(Cout, 1)

    # Tiny per-kw column-wrap validity mask (K, H*W), {0,1} (trace-time numpy).
    ww = np.arange(W)
    colmask = np.ones((K, HW), np.float32)
    for kw in range(K):
        ok = ((ww + kw - p >= 0) & (ww + kw - p < W)).astype(np.float32)
        colmask[kw] = np.tile(ok, H)
    colm = jnp.asarray(colmask).astype(mxu_dtype)

    vmem_limit = min(int(phys_vmem * 0.85),
                     max(32 * 1024 * 1024, 2 * est_vmem(B)))

    n_transc = N * Cout * HW if activation in ("elu", "selu", "gelu",
                                               "mish", "swish") else 0
    cost = pl.CostEstimate(
        flops=2 * N * HW * Cout * KKC,
        transcendentals=n_transc,
        bytes_accessed=(N * Cin * HW * elem + N * HW * 4 + Cout * KKC * elem
                        + K * HW * elem + N * Cout * HW * 4))

    kernel = make_conv_block_kernel(H, W, K, B, zpad, activation)
    out = pl.pallas_call(
        kernel,
        out_shape=jax.ShapeDtypeStruct((N, Cout, HW), out_dtype),
        grid_spec=pltpu.PrefetchScalarGridSpec(
            num_scalar_prefetch=0,
            grid=(N // B,),
            in_specs=[
                pl.BlockSpec((B, Cin, HW), lambda n: (n, 0, 0)),
                pl.BlockSpec((Cout, KKC), lambda n: (0, 0)),
                pl.BlockSpec((K, HW), lambda n: (0, 0)),
                pl.BlockSpec((B, 1, HW), lambda n: (n, 0, 0)),
                pl.BlockSpec((Cout, 1), lambda n: (0, 0)),
                pl.BlockSpec((Cout, 1), lambda n: (0, 0)),
            ],
            out_specs=pl.BlockSpec((B, Cout, HW), lambda n: (n, 0, 0)),
            scratch_shapes=[
                pltpu.VMEM((B, Cin, HW + 2 * zpad), mxu_dtype),
                pltpu.VMEM((KKC, B * HW), mxu_dtype),
            ],
        ),
        compiler_params=pltpu.CompilerParams(
            dimension_semantics=("parallel",),
            vmem_limit_bytes=vmem_limit),
        cost_estimate=cost,
    )(x2, w2, colm, m2, scale2, shift2)

    return out.reshape(N, Cout, H, W)     # free: contiguous reshape back to NCHW


if __name__ == "__main__":
    # Small, deterministic problem consistent with ConvBlock(in=4, out=8, k=3).
    N, Cin, Cout, H, W, K = 2, 4, 8, 16, 16, 3
    activation = "relu"
    use_gamma = True
    eps = 1e-5

    key = jax.random.PRNGKey(0)
    k_x, k_m, k_w, k_mean, k_var, k_gamma, k_beta = jax.random.split(key, 7)

    x = jax.random.normal(k_x, (N, Cin, H, W), jnp.float32)
    mask = (jax.random.uniform(k_m, (N, 1, H, W)) > 0.2).astype(jnp.float32)

    # Conv weight: xavier_normal_ with gain = compute_gain('relu') = sqrt(2).
    gain = math.sqrt(2.0)
    fan_in, fan_out = Cin * K * K, Cout * K * K
    w_std = gain * math.sqrt(2.0 / (fan_in + fan_out))
    weight = w_std * jax.random.normal(k_w, (Cout, Cin, K, K), jnp.float32)

    # BatchNorm parameters / buffers (shapes from __init__: all (Cout,)).
    running_mean = 0.1 * jax.random.normal(k_mean, (Cout,), jnp.float32)
    running_var = jnp.abs(jax.random.normal(k_var, (Cout,), jnp.float32)) + 0.5
    gamma = (1.0 + 0.1 * jax.random.normal(k_gamma, (Cout,), jnp.float32)
             if use_gamma else jnp.ones((Cout,), jnp.float32))
    beta = 0.1 * jax.random.normal(k_beta, (Cout,), jnp.float32)

    bn_std = jnp.sqrt(running_var + eps)
    scale = gamma / bn_std
    shift = beta - running_mean * scale

    out = conv_block_forward(x, mask, weight, scale, shift, activation)
    out = jax.block_until_ready(out)

    # Pure-JAX references.
    def conv(xx, ww):
        return jax.lax.conv_general_dilated(
            xx, ww, window_strides=(1, 1), padding="SAME",
            dimension_numbers=("NCHW", "OIHW", "NCHW"),
            preferred_element_type=jnp.float32)

    def bn_mask_act(c):
        cm = c * mask
        bn = (cm - running_mean[None, :, None, None]) / bn_std[None, :, None, None]
        bn = bn * gamma[None, :, None, None] + beta[None, :, None, None]
        bn = bn * mask
        return jnp.maximum(bn, 0.0)

    # (a) tight check vs. a reference using identically bf16-quantized conv
    #     operands (what the kernel's MXU sees): only accumulation-order noise.
    xq = x.astype(jnp.bfloat16).astype(jnp.float32)
    wq = weight.astype(jnp.bfloat16).astype(jnp.float32)
    ref_q = bn_mask_act(conv(xq, wq))
    # (b) loose check vs. the full-f32 reference (bf16 operand rounding only).
    ref_f32 = bn_mask_act(conv(x, weight))

    err_q = float(jnp.max(jnp.abs(out - ref_q)))
    err_f = float(jnp.max(jnp.abs(out - ref_f32)))
    assert jnp.allclose(out, ref_q, atol=2e-3, rtol=2e-3), f"max abs err {err_q}"
    assert jnp.allclose(out, ref_f32, atol=6e-2, rtol=6e-2), f"max abs err {err_f}"
    print("KERNEL_OK")
</pallas_src>

<mosaic_0001>
module attributes {stable_mosaic.version = 11 : i64} {
  func.func @kernel(%arg0: i32, %arg1: memref<1x4x256xbf16, #tpu.memory_space<vmem>>, %arg2: memref<8x36xbf16, #tpu.memory_space<vmem>>, %arg3: memref<3x256xbf16, #tpu.memory_space<vmem>>, %arg4: memref<1x1x256xf32, #tpu.memory_space<vmem>>, %arg5: memref<8x1xf32, #tpu.memory_space<vmem>>, %arg6: memref<8x1xf32, #tpu.memory_space<vmem>>, %arg7: memref<1x8x256xf32, #tpu.memory_space<vmem>>, %arg8: memref<1x4x512xbf16, #tpu.memory_space<vmem>>, %arg9: memref<36x256xbf16, #tpu.memory_space<vmem>>) attributes {dimension_semantics = [#tpu.dimension_semantics<parallel>], iteration_bounds = array<i64: 2>, scalar_prefetch = 0 : i64, scratch_operands = 2 : i64, tpu.core_type = #tpu.core_type<tc>, window_params = [{transform_indices = @transform_0, window_bounds = array<i64: 1, 4, 256>}, {pipeline_mode = #tpu.pipeline_mode<synchronous>, transform_indices = @transform_1, window_bounds = array<i64: 8, 36>}, {pipeline_mode = #tpu.pipeline_mode<synchronous>, transform_indices = @transform_2, window_bounds = array<i64: 3, 256>}, {transform_indices = @transform_3, window_bounds = array<i64: 1, 1, 256>}, {pipeline_mode = #tpu.pipeline_mode<synchronous>, transform_indices = @transform_4, window_bounds = array<i64: 8, 1>}, {pipeline_mode = #tpu.pipeline_mode<synchronous>, transform_indices = @transform_5, window_bounds = array<i64: 8, 1>}, {transform_indices = @transform_6, window_bounds = array<i64: 1, 8, 256>}]} {
    %cst = arith.constant 0.000000e+00 : bf16
    %0 = vector.broadcast %cst : bf16 to vector<1x4x128xbf16>
    %c0 = arith.constant 0 : index
    %c0_0 = arith.constant 0 : index
    %c0_1 = arith.constant 0 : index
    %1 = vector.load %arg8[%c0, %c0_0, %c0_1] : memref<1x4x512xbf16, #tpu.memory_space<vmem>>, vector<1x4x128xbf16>
    tpu.vector_store %arg8[%c0, %c0_0, %c0_1], %0 {strides = array<i32>} : memref<1x4x512xbf16, #tpu.memory_space<vmem>>, vector<1x4x128xbf16>,
    %c0_2 = arith.constant 0 : index
    %c0_3 = arith.constant 0 : index
    %c384 = arith.constant 384 : index
    %2 = vector.load %arg8[%c0_2, %c0_3, %c384] : memref<1x4x512xbf16, #tpu.memory_space<vmem>>, vector<1x4x128xbf16>
    tpu.vector_store %arg8[%c0_2, %c0_3, %c384], %0 {strides = array<i32>} : memref<1x4x512xbf16, #tpu.memory_space<vmem>>, vector<1x4x128xbf16>,
    %c0_4 = arith.constant 0 : index
    %c0_5 = arith.constant 0 : index
    %c0_6 = arith.constant 0 : index
    %3 = vector.load %arg1[%c0_4, %c0_5, %c0_6] : memref<1x4x256xbf16, #tpu.memory_space<vmem>>, vector<1x4x256xbf16>
    %c0_7 = arith.constant 0 : index
    %c0_8 = arith.constant 0 : index
    %c128 = arith.constant 128 : index
    %4 = vector.load %arg8[%c0_7, %c0_8, %c128] : memref<1x4x512xbf16, #tpu.memory_space<vmem>>, vector<1x4x256xbf16>
    tpu.vector_store %arg8[%c0_7, %c0_8, %c128], %3 {strides = array<i32>} : memref<1x4x512xbf16, #tpu.memory_space<vmem>>, vector<1x4x256xbf16>,
    %c0_9 = arith.constant 0 : index
    %c0_10 = arith.constant 0 : index
    %c111 = arith.constant 111 : index
    %5 = vector.load %arg8[%c0_9, %c0_10, %c111] : memref<1x4x512xbf16, #tpu.memory_space<vmem>>, vector<1x4x256xbf16>
    %6 = vector.shape_cast %5 : vector<1x4x256xbf16> to vector<4x256xbf16>
    %c0_11 = arith.constant 0 : index
    %c0_12 = arith.constant 0 : index
    %7 = vector.load %arg3[%c0_11, %c0_12] : memref<3x256xbf16, #tpu.memory_space<vmem>>, vector<1x256xbf16>
    %8 = vector.broadcast %7 : vector<1x256xbf16> to vector<4x256xbf16>
    %9 = arith.mulf %6, %8 : vector<4x256xbf16>
    %c0_13 = arith.constant 0 : index
    %c0_14 = arith.constant 0 : index
    %10 = vector.load %arg9[%c0_13, %c0_14] : memref<36x256xbf16, #tpu.memory_space<vmem>>, vector<4x256xbf16>
    tpu.vector_store %arg9[%c0_13, %c0_14], %9 {strides = array<i32>} : memref<36x256xbf16, #tpu.memory_space<vmem>>, vector<4x256xbf16>,
    %c0_15 = arith.constant 0 : index
    %c0_16 = arith.constant 0 : index
    %c112 = arith.constant 112 : index
    %11 = vector.load %arg8[%c0_15, %c0_16, %c112] : memref<1x4x512xbf16, #tpu.memory_space<vmem>>, vector<1x4x256xbf16>
    %12 = vector.shape_cast %11 : vector<1x4x256xbf16> to vector<4x256xbf16>
    %c4 = arith.constant 4 : index
    %c0_17 = arith.constant 0 : index
    %13 = vector.load %arg9[%c4, %c0_17] : memref<36x256xbf16, #tpu.memory_space<vmem>>, vector<4x256xbf16>
    tpu.vector_store %arg9[%c4, %c0_17], %12 {strides = array<i32>} : memref<36x256xbf16, #tpu.memory_space<vmem>>, vector<4x256xbf16>,
    %c0_18 = arith.constant 0 : index
    %c0_19 = arith.constant 0 : index
    %c113 = arith.constant 113 : index
    %14 = vector.load %arg8[%c0_18, %c0_19, %c113] : memref<1x4x512xbf16, #tpu.memory_space<vmem>>, vector<1x4x256xbf16>
    %15 = vector.shape_cast %14 : vector<1x4x256xbf16> to vector<4x256xbf16>
    %c2 = arith.constant 2 : index
    %c0_20 = arith.constant 0 : index
    %16 = vector.load %arg3[%c2, %c0_20] : memref<3x256xbf16, #tpu.memory_space<vmem>>, vector<1x256xbf16>
    %17 = vector.broadcast %16 : vector<1x256xbf16> to vector<4x256xbf16>
    %18 = arith.mulf %15, %17 : vector<4x256xbf16>
    %c8 = arith.constant 8 : index
    %c0_21 = arith.constant 0 : index
    %19 = vector.load %arg9[%c8, %c0_21] : memref<36x256xbf16, #tpu.memory_space<vmem>>, vector<4x256xbf16>
    tpu.vector_store %arg9[%c8, %c0_21], %18 {strides = array<i32>} : memref<36x256xbf16, #tpu.memory_space<vmem>>, vector<4x256xbf16>,
    %c0_22 = arith.constant 0 : index
    %c0_23 = arith.constant 0 : index
    %c127 = arith.constant 127 : index
    %20 = vector.load %arg8[%c0_22, %c0_23, %c127] : memref<1x4x512xbf16, #tpu.memory_space<vmem>>, vector<1x4x256xbf16>
    %21 = vector.shape_cast %20 : vector<1x4x256xbf16> to vector<4x256xbf16>
    %c0_24 = arith.constant 0 : index
    %c0_25 = arith.constant 0 : index
    %22 = vector.load %arg3[%c0_24, %c0_25] : memref<3x256xbf16, #tpu.memory_space<vmem>>, vector<1x256xbf16>
    %23 = vector.broadcast %22 : vector<1x256xbf16> to vector<4x256xbf16>
    %24 = arith.mulf %21, %23 : vector<4x256xbf16>
    %c12 = arith.constant 12 : index
    %c0_26 = arith.constant 0 : index
    %25 = vector.load %arg9[%c12, %c0_26] : memref<36x256xbf16, #tpu.memory_space<vmem>>, vector<4x256xbf16>
    tpu.vector_store %arg9[%c12, %c0_26], %24 {strides = array<i32>} : memref<36x256xbf16, #tpu.memory_space<vmem>>, vector<4x256xbf16>,
    %c0_27 = arith.constant 0 : index
    %c0_28 = arith.constant 0 : index
    %c128_29 = arith.constant 128 : index
    %26 = vector.load %arg8[%c0_27, %c0_28, %c128_29] : memref<1x4x512xbf16, #tpu.memory_space<vmem>>, vector<1x4x256xbf16>
    %27 = vector.shape_cast %26 : vector<1x4x256xbf16> to vector<4x256xbf16>
    %c16 = arith.constant 16 : index
    %c0_30 = arith.constant 0 : index
    %28 = vector.load %arg9[%c16, %c0_30] : memref<36x256xbf16, #tpu.memory_space<vmem>>, vector<4x256xbf16>
    tpu.vector_store %arg9[%c16, %c0_30], %27 {strides = array<i32>} : memref<36x256xbf16, #tpu.memory_space<vmem>>, vector<4x256xbf16>,
    %c0_31 = arith.constant 0 : index
    %c0_32 = arith.constant 0 : index
    %c129 = arith.constant 129 : index
    %29 = vector.load %arg8[%c0_31, %c0_32, %c129] : memref<1x4x512xbf16, #tpu.memory_space<vmem>>, vector<1x4x256xbf16>
    %30 = vector.shape_cast %29 : vector<1x4x256xbf16> to vector<4x256xbf16>
    %c2_33 = arith.constant 2 : index
    %c0_34 = arith.constant 0 : index
    %31 = vector.load %arg3[%c2_33, %c0_34] : memref<3x256xbf16, #tpu.memory_space<vmem>>, vector<1x256xbf16>
    %32 = vector.broadcast %31 : vector<1x256xbf16> to vector<4x256xbf16>
    %33 = arith.mulf %30, %32 : vector<4x256xbf16>
    %c20 = arith.constant 20 : index
    %c0_35 = arith.constant 0 : index
    %34 = vector.load %arg9[%c20, %c0_35] : memref<36x256xbf16, #tpu.memory_space<vmem>>, vector<4x256xbf16>
    tpu.vector_store %arg9[%c20, %c0_35], %33 {strides = array<i32>} : memref<36x256xbf16, #tpu.memory_space<vmem>>, vector<4x256xbf16>,
    %c0_36 = arith.constant 0 : index
    %c0_37 = arith.constant 0 : index
    %c143 = arith.constant 143 : index
    %35 = vector.load %arg8[%c0_36, %c0_37, %c143] : memref<1x4x512xbf16, #tpu.memory_space<vmem>>, vector<1x4x256xbf16>
    %36 = vector.shape_cast %35 : vector<1x4x256xbf16> to vector<4x256xbf16>
    %c0_38 = arith.constant 0 : index
    %c0_39 = arith.constant 0 : index
    %37 = vector.load %arg3[%c0_38, %c0_39] : memref<3x256xbf16, #tpu.memory_space<vmem>>, vector<1x256xbf16>
    %38 = vector.broadcast %37 : vector<1x256xbf16> to vector<4x256xbf16>
    %39 = arith.mulf %36, %38 : vector<4x256xbf16>
    %c24 = arith.constant 24 : index
    %c0_40 = arith.constant 0 : index
    %40 = vector.load %arg9[%c24, %c0_40] : memref<36x256xbf16, #tpu.memory_space<vmem>>, vector<4x256xbf16>
    tpu.vector_store %arg9[%c24, %c0_40], %39 {strides = array<i32>} : memref<36x256xbf16, #tpu.memory_space<vmem>>, vector<4x256xbf16>,
    %c0_41 = arith.constant 0 : index
    %c0_42 = arith.constant 0 : index
    %c144 = arith.constant 144 : index
    %41 = vector.load %arg8[%c0_41, %c0_42, %c144] : memref<1x4x512xbf16, #tpu.memory_space<vmem>>, vector<1x4x256xbf16>
    %42 = vector.shape_cast %41 : vector<1x4x256xbf16> to vector<4x256xbf16>
    %c28 = arith.constant 28 : index
    %c0_43 = arith.constant 0 : index
    %43 = vector.load %arg9[%c28, %c0_43] : memref<36x256xbf16, #tpu.memory_space<vmem>>, vector<4x256xbf16>
    tpu.vector_store %arg9[%c28, %c0_43], %42 {strides = array<i32>} : memref<36x256xbf16, #tpu.memory_space<vmem>>, vector<4x256xbf16>,
    %c0_44 = arith.constant 0 : index
    %c0_45 = arith.constant 0 : index
    %c145 = arith.constant 145 : index
    %44 = vector.load %arg8[%c0_44, %c0_45, %c145] : memref<1x4x512xbf16, #tpu.memory_space<vmem>>, vector<1x4x256xbf16>
    %45 = vector.shape_cast %44 : vector<1x4x256xbf16> to vector<4x256xbf16>
    %c2_46 = arith.constant 2 : index
    %c0_47 = arith.constant 0 : index
    %46 = vector.load %arg3[%c2_46, %c0_47] : memref<3x256xbf16, #tpu.memory_space<vmem>>, vector<1x256xbf16>
    %47 = vector.broadcast %46 : vector<1x256xbf16> to vector<4x256xbf16>
    %48 = arith.mulf %45, %47 : vector<4x256xbf16>
    %c32 = arith.constant 32 : index
    %c0_48 = arith.constant 0 : index
    %49 = vector.load %arg9[%c32, %c0_48] : memref<36x256xbf16, #tpu.memory_space<vmem>>, vector<4x256xbf16>
    tpu.vector_store %arg9[%c32, %c0_48], %48 {strides = array<i32>} : memref<36x256xbf16, #tpu.memory_space<vmem>>, vector<4x256xbf16>,
    %c0_49 = arith.constant 0 : index
    %c0_50 = arith.constant 0 : index
    %50 = vector.load %arg2[%c0_49, %c0_50] : memref<8x36xbf16, #tpu.memory_space<vmem>>, vector<8x36xbf16>
    %c0_51 = arith.constant 0 : index
    %c0_52 = arith.constant 0 : index
    %51 = vector.load %arg9[%c0_51, %c0_52] : memref<36x256xbf16, #tpu.memory_space<vmem>>, vector<36x256xbf16>
    %cst_53 = arith.constant dense<0.000000e+00> : vector<8x256xf32>
    %52 = tpu.matmul %50, %51, %cst_53 {dimension_numbers = #tpu.dot_dimension_numbers<[1], [0], [0], [1], [0, 0, 1, 1], [], []>} : vector<8x36xbf16>, vector<36x256xbf16>, vector<8x256xf32> -> vector<8x256xf32>
    %c0_54 = arith.constant 0 : index
    %c0_55 = arith.constant 0 : index
    %53 = vector.load %arg5[%c0_54, %c0_55] : memref<8x1xf32, #tpu.memory_space<vmem>>, vector<8x1xf32>
    %54 = vector.shape_cast %53 : vector<8x1xf32> to vector<8x1xf32>
    %55 = vector.broadcast %54 : vector<8x1xf32> to vector<8x256xf32>
    %c0_56 = arith.constant 0 : index
    %c0_57 = arith.constant 0 : index
    %56 = vector.load %arg6[%c0_56, %c0_57] : memref<8x1xf32, #tpu.memory_space<vmem>>, vector<8x1xf32>
    %57 = vector.shape_cast %56 : vector<8x1xf32> to vector<8x1xf32>
    %58 = vector.broadcast %57 : vector<8x1xf32> to vector<8x256xf32>
    %c0_58 = arith.constant 0 : index
    %c0_59 = arith.constant 0 : index
    %c0_60 = arith.constant 0 : index
    %59 = vector.load %arg4[%c0_58, %c0_59, %c0_60] : memref<1x1x256xf32, #tpu.memory_space<vmem>>, vector<1x1x256xf32>
    %60 = vector.shape_cast %59 : vector<1x1x256xf32> to vector<1x256xf32>
    %61 = vector.broadcast %60 : vector<1x256xf32> to vector<8x256xf32>
    %62 = arith.mulf %52, %61 : vector<8x256xf32>
    %63 = arith.mulf %62, %55 : vector<8x256xf32>
    %64 = arith.addf %63, %58 : vector<8x256xf32>
    %65 = vector.broadcast %60 : vector<1x256xf32> to vector<8x256xf32>
    %66 = arith.mulf %64, %65 : vector<8x256xf32>
    %cst_61 = arith.constant 0.000000e+00 : f32
    %67 = vector.broadcast %cst_61 : f32 to vector<8x256xf32>
    %68 = arith.maximumf %66, %67 : vector<8x256xf32>
    %c0_62 = arith.constant 0 : index
    %c0_63 = arith.constant 0 : index
    %c0_64 = arith.constant 0 : index
    %69 = vector.load %arg7[%c0_62, %c0_63, %c0_64] : memref<1x8x256xf32, #tpu.memory_space<vmem>>, vector<1x8x256xf32>
    %70 = vector.shape_cast %69 : vector<1x8x256xf32> to vector<8x256xf32>
    %71 = vector.shape_cast %68 : vector<8x256xf32> to vector<1x8x256xf32>
    tpu.vector_store %arg7[%c0_62, %c0_63, %c0_64], %71 {strides = array<i32>} : memref<1x8x256xf32, #tpu.memory_space<vmem>>, vector<1x8x256xf32>,
    return
  }
  func.func @transform_0(%arg0: i32) -> (i32, i32, i32) {
    %c0_i32 = arith.constant 0 : i32
    %c0_i32_0 = arith.constant 0 : i32
    %c0_i32_1 = arith.constant 0 : i32
    return %arg0, %c0_i32, %c0_i32_0 : i32, i32, i32
  }
  func.func @transform_1(%arg0: i32) -> (i32, i32) {
    %c0_i32 = arith.constant 0 : i32
    %c0_i32_0 = arith.constant 0 : i32
    %c0_i32_1 = arith.constant 0 : i32
    return %c0_i32, %c0_i32_0 : i32, i32
  }
  func.func @transform_2(%arg0: i32) -> (i32, i32) {
    %c0_i32 = arith.constant 0 : i32
    %c0_i32_0 = arith.constant 0 : i32
    %c0_i32_1 = arith.constant 0 : i32
    return %c0_i32, %c0_i32_0 : i32, i32
  }
  func.func @transform_3(%arg0: i32) -> (i32, i32, i32) {
    %c0_i32 = arith.constant 0 : i32
    %c0_i32_0 = arith.constant 0 : i32
    %c0_i32_1 = arith.constant 0 : i32
    return %arg0, %c0_i32, %c0_i32_0 : i32, i32, i32
  }
  func.func @transform_4(%arg0: i32) -> (i32, i32) {
    %c0_i32 = arith.constant 0 : i32
    %c0_i32_0 = arith.constant 0 : i32
    %c0_i32_1 = arith.constant 0 : i32
    return %c0_i32, %c0_i32_0 : i32, i32
  }
  func.func @transform_5(%arg0: i32) -> (i32, i32) {
    %c0_i32 = arith.constant 0 : i32
    %c0_i32_0 = arith.constant 0 : i32
    %c0_i32_1 = arith.constant 0 : i32
    return %c0_i32, %c0_i32_0 : i32, i32
  }
  func.func @transform_6(%arg0: i32) -> (i32, i32, i32) {
    %c0_i32 = arith.constant 0 : i32
    %c0_i32_0 = arith.constant 0 : i32
    %c0_i32_1 = arith.constant 0 : i32
    return %arg0, %c0_i32, %c0_i32_0 : i32, i32, i32
  }
}

</mosaic_0001>

<llo_original>
// kernel: tpu_custom_call.1
$region0: #{tpu_custom_call.1}
  #allocation0 [shape = 'u32[]', space=smem, size = 0x4, offset = 0x4, fixed_abs, tag = 'smem constant byte address 0x4 - core index']
  #allocation1 [shape = 'u32[144,128]{1,0:T(1,128)}', space=vmem, size = 0x12000, scoped, tag = 'internal scratch']
  #allocation2 [shape = 'bf16[1,4,512]{2,1,0:T(4,128)(2,1)}', space=vmem, size = 0x1000, scoped, tag = 'scratch operand']
  #allocation3 [shape = 'bf16[36,256]{1,0:T(8,128)(2,1)}', space=vmem, size = 0x5000, scoped, tag = 'scratch operand']
  %s0 = inlined_call_operand.vmem [shape: bf16[2,4,256], index: 0, kind: input, shape index: {}]
  %s1 = inlined_call_operand.vmem [shape: bf16[8,36], index: 1, kind: input, shape index: {}]
  %s2 = inlined_call_operand.vmem [shape: bf16[3,256], index: 2, kind: input, shape index: {}]
  %s3 = inlined_call_operand.vmem [shape: f32[2,1,256], index: 3, kind: input, shape index: {}]
  %s4 = inlined_call_operand.vmem [shape: f32[8,1], index: 4, kind: input, shape index: {}]
  %s5 = inlined_call_operand.vmem [shape: f32[8,1], index: 5, kind: input, shape index: {}]
  %s6 = inlined_call_operand.hbm [shape: f32[2,8,256], index: 6, kind: output, shape index: {}]
  %s7 = sld [smem:[#allocation0]]
  $region57: #{tpu_custom_call.1} parent=0
    _
  %s9 = ssub.s32 1, %s7
  %s10 = scalar_select 0, %s9, %s7
  $region1: #{tpu_custom_call.1} parent=0
    #allocation4 [shape = 'u8[16384]{0}', space=vmem, size = 0x4000, scoped, tag = 'output window, operand 0']
    #allocation5 [shape = 's32[2]{0}', space=sflag, size = 0x8, scoped, tag = 'scoped memory for tpu_custom_call.1']
    %11 = vsyncpa [#allocation5], 0
    %s12 = scalar_lea.sflag [#allocation5], 1
    %13 = vsyncpa %s12, 0
    loop: start=0, step=1, limit=4
    $region2: #{tpu_custom_call.1} parent=1 // loop_pre_header
      _
    $region3: #{tpu_custom_call.1} parent=1 // loop_header
      %s15 = sphi 0, %s19
      %p16 = scmp.ge.s32.totalorder %s15, 4
      %s25 = sphi 0, %s27
      %s28 = sphi 0, %s25
      %s29 = sphi 0, %s28
      %s45 = sphi 0, %s29
      %s49 = sphi 0, %s49
      %s51 = sphi 0, %s49
      %s52 = sphi 0, %s51
      %s66 = sphi 0, %s52
      %s70 = sphi 0, %s70
      %s72 = sphi 0, %s70
      %s73 = sphi 0, %s72
      %s87 = sphi 0, %s73
      %s93 = sphi 0, %s95
      %s96 = sphi 0, %s93
      %s97 = sphi 0, %s96
      %s113 = sphi 0, %s97
      %s117 = sphi 0, %s117
      %s119 = sphi 0, %s117
      %s120 = sphi 0, %s119
      %s134 = sphi 0, %s120
      %s138 = sphi 0, %s138
      %s140 = sphi 0, %s138
      %s141 = sphi 0, %s140
      %s155 = sphi 0, %s141
      %s161 = sphi 0, %s163
      %s164 = sphi 0, %s161
      %s165 = sphi 0, %s164
      %s181 = sphi 0, %s165
    $region4: #{tpu_custom_call.1} parent=1 // loop_header_branch
      %18 = sbr.rel (%p16) target = $region8
    $region5: #{tpu_custom_call.1} parent=1 // loop_body
      %s20 = ssub.s32 %s15, 1
      %s21 = ssub.s32 %s15, 2
      %s22 = sadd.s32 %s15, 1
      %s23 = ssub.s32 %s15, %s22
      %p24 = scmp.eq.s32.totalorder %s23, 0
      %s26 = sadd.s32 %s25, 1
      %s27 = scalar_select %p24, %s25, %s26
      %p30 = pneg %p24
      %p31 = scmp.eq.s32.totalorder %s15, 1
      %p32 = por %p30, %p31
      %p33 = scmp.ne.s32.totalorder %s25, %s28
      %p34 = scmp.eq.s32.totalorder %s15, 0
      %p35 = por %p33, %p34
      %p36 = scmp.ne.s32.totalorder %s25, %s28
      %p37 = scmp.eq.s32.totalorder %s20, 1
      %p38 = por %p36, %p37
      %p39 = scmp.ne.s32.totalorder %s28, %s29
      %p40 = scmp.eq.s32.totalorder %s20, 0
      %p41 = por %p39, %p40
      %p42 = scmp.ne.s32.totalorder %s28, %s29
      %p43 = scmp.eq.s32.totalorder %s21, 1
      %p44 = por %p42, %p43
      %p46 = scmp.ne.s32.totalorder %s29, %s45
      %p47 = scmp.eq.s32.totalorder %s21, 0
      %p48 = por %p46, %p47
      %s50 = sadd.s32 %s49, 1
      %p53 = scmp.eq.s32.totalorder %s15, 1
      %p54 = scmp.ne.s32.totalorder %s49, %s51
      %p55 = scmp.eq.s32.totalorder %s15, 0
      %p56 = por %p54, %p55
      %p57 = scmp.ne.s32.totalorder %s49, %s51
      %p58 = scmp.eq.s32.totalorder %s20, 1
      %p59 = por %p57, %p58
      %p60 = scmp.ne.s32.totalorder %s51, %s52
      %p61 = scmp.eq.s32.totalorder %s20, 0
      %p62 = por %p60, %p61
      %p63 = scmp.ne.s32.totalorder %s51, %s52
      %p64 = scmp.eq.s32.totalorder %s21, 1
      %p65 = por %p63, %p64
      %p67 = scmp.ne.s32.totalorder %s52, %s66
      %p68 = scmp.eq.s32.totalorder %s21, 0
      %p69 = por %p67, %p68
      %s71 = sadd.s32 %s70, 1
      %p74 = scmp.eq.s32.totalorder %s15, 1
      %p75 = scmp.ne.s32.totalorder %s70, %s72
      %p76 = scmp.eq.s32.totalorder %s15, 0
      %p77 = por %p75, %p76
      %p78 = scmp.ne.s32.totalorder %s70, %s72
      %p79 = scmp.eq.s32.totalorder %s20, 1
      %p80 = por %p78, %p79
      %p81 = scmp.ne.s32.totalorder %s72, %s73
      %p82 = scmp.eq.s32.totalorder %s20, 0
      %p83 = por %p81, %p82
      %p84 = scmp.ne.s32.totalorder %s72, %s73
      %p85 = scmp.eq.s32.totalorder %s21, 1
      %p86 = por %p84, %p85
      %p88 = scmp.ne.s32.totalorder %s73, %s87
      %p89 = scmp.eq.s32.totalorder %s21, 0
      %p90 = por %p88, %p89
      %s91 = ssub.s32 %s15, %s22
      %p92 = scmp.eq.s32.totalorder %s91, 0
      %s94 = sadd.s32 %s93, 1
      %s95 = scalar_select %p92, %s93, %s94
      %p98 = pneg %p92
      %p99 = scmp.eq.s32.totalorder %s15, 1
      %p100 = por %p98, %p99
      %p101 = scmp.ne.s32.totalorder %s93, %s96
      %p102 = scmp.eq.s32.totalorder %s15, 0
      %p103 = por %p101, %p102
      %p104 = scmp.ne.s32.totalorder %s93, %s96
      %p105 = scmp.eq.s32.totalorder %s20, 1
      %p106 = por %p104, %p105
      %p107 = scmp.ne.s32.totalorder %s96, %s97
      %p108 = scmp.eq.s32.totalorder %s20, 0
      %p109 = por %p107, %p108
      %p110 = scmp.ne.s32.totalorder %s96, %s97
      %p111 = scmp.eq.s32.totalorder %s21, 1
      %p112 = por %p110, %p111
      %p114 = scmp.ne.s32.totalorder %s97, %s113
      %p115 = scmp.eq.s32.totalorder %s21, 0
      %p116 = por %p114, %p115
      %s118 = sadd.s32 %s117, 1
      %p121 = scmp.eq.s32.totalorder %s15, 1
      %p122 = scmp.ne.s32.totalorder %s117, %s119
      %p123 = scmp.eq.s32.totalorder %s15, 0
      %p124 = por %p122, %p123
      %p125 = scmp.ne.s32.totalorder %s117, %s119
      %p126 = scmp.eq.s32.totalorder %s20, 1
      %p127 = por %p125, %p126
      %p128 = scmp.ne.s32.totalorder %s119, %s120
      %p129 = scmp.eq.s32.totalorder %s20, 0
      %p130 = por %p128, %p129
      %p131 = scmp.ne.s32.totalorder %s119, %s120
      %p132 = scmp.eq.s32.totalorder %s21, 1
      %p133 = por %p131, %p132
      %p135 = scmp.ne.s32.totalorder %s120, %s134
      %p136 = scmp.eq.s32.totalorder %s21, 0
      %p137 = por %p135, %p136
      %s139 = sadd.s32 %s138, 1
      %p142 = scmp.eq.s32.totalorder %s15, 1
      %p143 = scmp.ne.s32.totalorder %s138, %s140
      %p144 = scmp.eq.s32.totalorder %s15, 0
      %p145 = por %p143, %p144
      %p146 = scmp.ne.s32.totalorder %s138, %s140
      %p147 = scmp.eq.s32.totalorder %s20, 1
      %p148 = por %p146, %p147
      %p149 = scmp.ne.s32.totalorder %s140, %s141
      %p150 = scmp.eq.s32.totalorder %s20, 0
      %p151 = por %p149, %p150
      %p152 = scmp.ne.s32.totalorder %s140, %s141
      %p153 = scmp.eq.s32.totalorder %s21, 1
      %p154 = por %p152, %p153
      %p156 = scmp.ne.s32.totalorder %s141, %s155
      %p157 = scmp.eq.s32.totalorder %s21, 0
      %p158 = por %p156, %p157
      %s159 = ssub.s32 %s15, %s22
      %p160 = scmp.eq.s32.totalorder %s159, 0
      %s162 = sadd.s32 %s161, 1
      %s163 = scalar_select %p160, %s161, %s162
      %p166 = pneg %p160
      %p167 = scmp.eq.s32.totalorder %s15, 1
      %p168 = por %p166, %p167
      %p169 = scmp.ne.s32.totalorder %s161, %s164
      %p170 = scmp.eq.s32.totalorder %s15, 0
      %p171 = por %p169, %p170
      %p172 = scmp.ne.s32.totalorder %s161, %s164
      %p173 = scmp.eq.s32.totalorder %s20, 1
      %p174 = por %p172, %p173
      %p175 = scmp.ne.s32.totalorder %s164, %s165
      %p176 = scmp.eq.s32.totalorder %s20, 0
      %p177 = por %p175, %p176
      %p178 = scmp.ne.s32.totalorder %s164, %s165
      %p179 = scmp.eq.s32.totalorder %s21, 1
      %p180 = por %p178, %p179
      %p182 = scmp.ne.s32.totalorder %s165, %s181
      %p183 = scmp.eq.s32.totalorder %s21, 0
      %p184 = por %p182, %p183
      %p185 = scmp.le.s32.totalorder 1, %s15
      %p186 = scmp.lt.s32.totalorder %s15, 3
      %p187 = pnand %p185, %p186
      %p188 = pneg %p187
      // Predicated region
      $region9: #{tpu_custom_call.1} parent=5 // pred_check
        _
      $region10: #{tpu_custom_call.1} parent=5 // pred_check_branch
        %190 = sbr.rel (%p187) target = $region12
      $region11: #{tpu_custom_call.1} parent=5 // pred_region
        %s191 = ssub.s32 %s15, 1
        // Predicated region
        $region13: #{tpu_custom_call.1} parent=11 // pred_check
          %p192 = pneg %p62
        $region14: #{tpu_custom_call.1} parent=11 // pred_check_branch
          %194 = sbr.rel (%p192) target = $region16
        $region15: #{tpu_custom_call.1} parent=11 // pred_region
          _
        $region16: #{tpu_custom_call.1} parent=11 // pred_fallthru
          _
        // Predicated region
        $region17: #{tpu_custom_call.1} parent=11 // pred_check
          %p195 = pneg %p83
        $region18: #{tpu_custom_call.1} parent=11 // pred_check_branch
          %197 = sbr.rel (%p195) target = $region20
        $region19: #{tpu_custom_call.1} parent=11 // pred_region
          _
        $region20: #{tpu_custom_call.1} parent=11 // pred_fallthru
          _
        // Predicated region
        $region21: #{tpu_custom_call.1} parent=11 // pred_check
          %p198 = pneg %p130
        $region22: #{tpu_custom_call.1} parent=11 // pred_check_branch
          %200 = sbr.rel (%p198) target = $region24
        $region23: #{tpu_custom_call.1} parent=11 // pred_region
          _
        $region24: #{tpu_custom_call.1} parent=11 // pred_fallthru
          _
        // Predicated region
        $region25: #{tpu_custom_call.1} parent=11 // pred_check
          %p201 = pneg %p151
        $region26: #{tpu_custom_call.1} parent=11 // pred_check_branch
          %203 = sbr.rel (%p201) target = $region28
        $region27: #{tpu_custom_call.1} parent=11 // pred_region
          _
        $region28: #{tpu_custom_call.1} parent=11 // pred_fallthru
          _
      $region12: #{tpu_custom_call.1} parent=5 // pred_fallthru
        _
      %p204 = scmp.lt.s32.totalorder %s15, 2
      // Predicated region
      $region29: #{tpu_custom_call.1} parent=5 // pred_check
        %p205 = pneg %p204
      $region30: #{tpu_custom_call.1} parent=5 // pred_check_branch
        %207 = sbr.rel (%p205) target = $region32
      $region31: #{tpu_custom_call.1} parent=5 // pred_region
        // Predicated region
        $region33: #{tpu_custom_call.1} parent=31 // pred_check
          %p208 = pneg %p35
        $region34: #{tpu_custom_call.1} parent=31 // pred_check_branch
          %210 = sbr.rel (%p208) target = $region36
        $region35: #{tpu_custom_call.1} parent=31 // pred_region
          %p211 = scmp.lt.s32.totalorder %s15, 1
          %s212 = scalar_select %p211, %s15, 1
          %s213 = smul.addr %s212, 2
          %s214 = smul.addr %s213, 2
          %s215 = scalar_lea.vmem %s0, %s214
        $region36: #{tpu_custom_call.1} parent=31 // pred_fallthru
          _
        // Predicated region
        $region37: #{tpu_custom_call.1} parent=31 // pred_check
          %p216 = pneg %p103
        $region38: #{tpu_custom_call.1} parent=31 // pred_check_branch
          %218 = sbr.rel (%p216) target = $region40
        $region39: #{tpu_custom_call.1} parent=31 // pred_region
          %p219 = scmp.lt.s32.totalorder %s15, 1
          %s220 = scalar_select %p219, %s15, 1
          %s221 = smul.addr %s220, 2
          %s222 = scalar_lea.vmem %s3, %s221
        $region40: #{tpu_custom_call.1} parent=31 // pred_fallthru
          _
      $region32: #{tpu_custom_call.1} parent=5 // pred_fallthru
        _
      %p223 = scmp.le.s32.totalorder 1, %s15
      %p224 = scmp.lt.s32.totalorder %s15, 3
      %p225 = pnand %p223, %p224
      %p226 = pneg %p225
      // Predicated region
      $region41: #{tpu_custom_call.1} parent=5 // pred_check
        _
      $region42: #{tpu_custom_call.1} parent=5 // pred_check_branch
        %228 = sbr.rel (%p225) target = $region44
      $region43: #{tpu_custom_call.1} parent=5 // pred_region
        %s229 = ssub.s32 %s15, 1
        %p230 = scmp.lt.s32.totalorder %s20, 1
        %s231 = scalar_select %p230, %s20, 1
        %s232 = smul.addr %s231, 2
        %s233 = smul.addr %s232, 2
        %s234 = scalar_lea.vmem %s0, %s233
        %p235 = pneg %p41
        %p236 = pneg %p38
        %p237 = pneg %p62
        %p238 = pneg %p59
        %p239 = pneg %p83
        %p240 = pneg %p80
        %p241 = scmp.lt.s32.totalorder %s20, 1
        %s242 = scalar_select %p241, %s20, 1
        %s243 = smul.addr %s242, 2
        %s244 = scalar_lea.vmem %s3, %s243
        %p245 = pneg %p109
        %p246 = pneg %p106
        %p247 = pneg %p130
        %p248 = pneg %p127
        %p249 = pneg %p151
        %p250 = pneg %p148
        %p251 = pneg %p177
        %p252 = pneg %p174
        %s253 = sand.u32 %s164, 1
        %s254 = scalar_lea.sflag [#allocation5], %s253
        %s255 = sand.u32 %s164, 1
        %s256 = smul.addr %s255, 16
        %s257 = scalar_lea.vmem [#allocation4], %s256
        %p258 = scmp.lt.s32.totalorder %s20, 1
        %s259 = scalar_select %p258, %s20, 1
        %s260 = smul.addr %s259, 2
        %s261 = smul.addr %s260, 2
        %s262 = scalar_lea.vmem %s0, %s261
        %p263 = scmp.lt.s32.totalorder %s20, 1
        %s264 = scalar_select %p263, %s20, 1
        %s265 = smul.addr %s264, 2
        %s266 = scalar_lea.vmem %s3, %s265
        %268 = vst [vmem:[#allocation2] sm:$0x3] 0
        %269 = vst [vmem:[#allocation2 + $0x6] sm:$0x3] 0
        %v270 = vld [vmem:[%s262] sm:$0xf]
        %271 = vst [vmem:[#allocation2 + $0x2] sm:$0xf] %v270
        %v272 = vld [vmem:[#allocation2] sm:$0x3f]
        %v273 = vld [vmem:[%s2] sm:$0x5]
        %v276 = vunpack.c.l.s4 1983009808
        %v277 = vunpack.c.0.s8 %v276
        %v278 = vlaneseq
        %v279 = vshrl.u32 %v278, 7
        %v280 = vsub.s32 %v277, %v279
        %v281 = vrot.slane %v273, %v280
        %v282 = vcombine.high %v281, %v281
        %v284 = vpack.i.b16 %v281, %v281
        %v286 = vlaneseq
        %v287 = vshrl.u32 %v286, 7
        %v288 = vsub.s32 0, %v287
        %v289 = vrot.slane %v284, %v288
        %v291 = vpack.i.b16 %v282, %v282
        %v293 = vlaneseq
        %v294 = vshrl.u32 %v293, 7
        %v295 = vsub.s32 0, %v294
        %v296 = vrot.slane %v291, %v295
        %v299 = vcombine.low %v289, %v296
        %v301 = vunpack.c.l.s4 1983009808
        %v302 = vunpack.c.0.s8 %v301
        %v303 = vlaneseq
        %v304 = vshrl.u32 %v303, 7
        %v305 = vsub.s32 %v302, %v304
        %v306 = vrot.slane %v299, %v305
        %307 = vrot.lane.b32.xlu0 %v306, 111
        %v308 = vpop.permute.xlu0 %307
        %v309 = vrot.slane %v308, 6
        %vm310 = vcmask 908288
        %v311 = vsel %vm310, %v309, %v308
        %v313 = vmul.bf16 %v272, %v311
        %v315 = vcombine.high %v313, %v313
        %v317 = vunpack.c.l.s4 1983009808
        %v318 = vunpack.c.0.s8 %v317
        %v319 = vlaneseq
        %v320 = vshrl.u32 %v319, 7
        %v321 = vsub.s32 %v318, %v320
        %v322 = vrot.slane %v313, %v321
        %v324 = vunpack.c.l.s4 1983009808
        %v325 = vunpack.c.0.s8 %v324
        %v326 = vlaneseq
        %v327 = vshrl.u32 %v326, 7
        %v328 = vsub.s32 %v325, %v327
        %v329 = vrot.slane %v315, %v328
        %330 = vrot.lane.b32.xlu0 %v322, 17
        %v331 = vpop.permute.xlu0 %330
        %332 = vrot.lane.b32.xlu0 %v329, 17
        %v333 = vpop.permute.xlu0 %332
        %v334 = vrot.slane %v331, 4
        %v335 = vrot.slane %v333, 4
        %vm336 = vcmask 1043456
        %v337 = vsel %vm336, %v334, %v335
        %vm338 = vcmask 138240
        %v339 = vsel %vm338, %v331, %v337
        %341 = vst [vmem:[#allocation3] sm:$0x33] %v339
        %v342 = vld [vmem:[#allocation2] sm:$0x3f]
        %v344 = vcombine.low %v342, %v342
        %v346 = vunpack.c.l.s4 1983009808
        %v347 = vunpack.c.0.s8 %v346
        %v348 = vlaneseq
        %v349 = vshrl.u32 %v348, 7
        %v350 = vsub.s32 %v347, %v349
        %v351 = vrot.slane %v344, %v350
        %v353 = vunpack.c.l.s4 1983009808
        %v354 = vunpack.c.0.s8 %v353
        %v355 = vlaneseq
        %v356 = vshrl.u32 %v355, 7
        %v357 = vsub.s32 %v354, %v356
        %v358 = vrot.slane %v342, %v357
        %359 = vrot.lane.b32.xlu0 %v351, 16
        %v360 = vpop.permute.xlu0 %359
        %361 = vrot.lane.b32.xlu0 %v358, 16
        %v362 = vpop.permute.xlu0 %361
        %v363 = vrot.slane %v360, 4
        %v364 = vrot.slane %v362, 4
        %v365 = vsel %vm336, %v363, %v364
        %vm366 = vcmask 130048
        %v367 = vsel %vm366, %v360, %v365
        %369 = vst [vmem:[#allocation3] sm:$0xcc] %v367
        %v370 = vld [vmem:[#allocation2] sm:$0x3f]
        %v371 = vld [vmem:[%s2] sm:$0xa]
        %v374 = vunpack.c.l.s4 1983009808
        %v375 = vunpack.c.0.s8 %v374
        %v376 = vlaneseq
        %v377 = vshrl.u32 %v376, 7
        %v378 = vsub.s32 %v375, %v377
        %v379 = vrot.slane %v371, %v378
        %v380 = vcombine.high %v379, %v379
        %v382 = vpack.i.b16 %v379, %v379
        %v384 = vlaneseq
        %v385 = vshrl.u32 %v384, 7
        %v386 = vsub.s32 1, %v385
        %v387 = vrot.slane %v382, %v386
        %v389 = vpack.i.b16 %v380, %v380
        %v391 = vlaneseq
        %v392 = vshrl.u32 %v391, 7
        %v393 = vsub.s32 1, %v392
        %v394 = vrot.slane %v389, %v393
        %v397 = vcombine.low %v387, %v394
        %v399 = vunpack.c.l.s4 1983009808
        %v400 = vunpack.c.0.s8 %v399
        %v401 = vlaneseq
        %v402 = vshrl.u32 %v401, 7
        %v403 = vsub.s32 %v400, %v402
        %v404 = vrot.slane %v397, %v403
        %405 = vrot.lane.b32.xlu0 %v404, 113
        %v406 = vpop.permute.xlu0 %405
        %v407 = vrot.slane %v406, 6
        %vm408 = vcmask 924672
        %v409 = vsel %vm408, %v407, %v406
        %v411 = vmul.bf16 %v370, %v409
        %v413 = vcombine.high %v411, %v411
        %v415 = vunpack.c.l.s4 1983009808
        %v416 = vunpack.c.0.s8 %v415
        %v417 = vlaneseq
        %v418 = vshrl.u32 %v417, 7
        %v419 = vsub.s32 %v416, %v418
        %v420 = vrot.slane %v411, %v419
        %v422 = vunpack.c.l.s4 1983009808
        %v423 = vunpack.c.0.s8 %v422
        %v424 = vlaneseq
        %v425 = vshrl.u32 %v424, 7
        %v426 = vsub.s32 %v423, %v425
        %v427 = vrot.slane %v413, %v426
        %428 = vrot.lane.b32.xlu0 %v420, 15
        %v429 = vpop.permute.xlu0 %428
        %430 = vrot.lane.b32.xlu0 %v427, 15
        %v431 = vpop.permute.xlu0 %430
        %v432 = vrot.slane %v429, 4
        %v433 = vrot.slane %v431, 4
        %v434 = vsel %vm336, %v432, %v433
        %vm435 = vcmask 121856
        %v436 = vsel %vm435, %v429, %v434
        %438 = vst [vmem:[#allocation3 + $0x8] sm:$0x33] %v436
        %v439 = vld [vmem:[#allocation2] sm:$0x3f]
        %v440 = vld [vmem:[%s2] sm:$0x5]
        %v443 = vunpack.c.l.s4 1983009808
        %v444 = vunpack.c.0.s8 %v443
        %v445 = vlaneseq
        %v446 = vshrl.u32 %v445, 7
        %v447 = vsub.s32 %v444, %v446
        %v448 = vrot.slane %v440, %v447
        %v449 = vcombine.high %v448, %v448
        %v451 = vpack.i.b16 %v448, %v448
        %v453 = vlaneseq
        %v454 = vshrl.u32 %v453, 7
        %v455 = vsub.s32 0, %v454
        %v456 = vrot.slane %v451, %v455
        %v458 = vpack.i.b16 %v449, %v449
        %v460 = vlaneseq
        %v461 = vshrl.u32 %v460, 7
        %v462 = vsub.s32 0, %v461
        %v463 = vrot.slane %v458, %v462
        %v466 = vcombine.low %v456, %v463
        %v468 = vunpack.c.l.s4 1983009808
        %v469 = vunpack.c.0.s8 %v468
        %v470 = vlaneseq
        %v471 = vshrl.u32 %v470, 7
        %v472 = vsub.s32 %v469, %v471
        %v473 = vrot.slane %v466, %v472
        %474 = vrot.lane.b32.xlu0 %v473, 127
        %v475 = vpop.permute.xlu0 %474
        %v476 = vrot.slane %v475, 6
        %vm477 = vcmask 1039360
        %v478 = vsel %vm477, %v476, %v475
        %v480 = vmul.bf16 %v439, %v478
        %v482 = vcombine.low %v480, %v480
        %v484 = vunpack.c.l.s4 1983009808
        %v485 = vunpack.c.0.s8 %v484
        %v486 = vlaneseq
        %v487 = vshrl.u32 %v486, 7
        %v488 = vsub.s32 %v485, %v487
        %v489 = vrot.slane %v482, %v488
        %v491 = vunpack.c.l.s4 1983009808
        %v492 = vunpack.c.0.s8 %v491
        %v493 = vlaneseq
        %v494 = vshrl.u32 %v493, 7
        %v495 = vsub.s32 %v492, %v494
        %v496 = vrot.slane %v480, %v495
        %497 = vrot.lane.b32.xlu0 %v489, 1
        %v498 = vpop.permute.xlu0 %497
        %499 = vrot.lane.b32.xlu0 %v496, 1
        %v500 = vpop.permute.xlu0 %499
        %v501 = vrot.slane %v498, 4
        %v502 = vrot.slane %v500, 4
        %v503 = vsel %vm336, %v501, %v502
        %vm504 = vcmask 7168
        %v505 = vsel %vm504, %v498, %v503
        %507 = vst [vmem:[#allocation3 + $0x8] sm:$0xcc] %v505
        %v508 = vld [vmem:[#allocation2 + $0x2] sm:$0xf]
        %v511 = vunpack.c.l.s4 1983009808
        %v512 = vunpack.c.0.s8 %v511
        %v513 = vlaneseq
        %v514 = vshrl.u32 %v513, 7
        %v515 = vsub.s32 %v512, %v514
        %v516 = vrot.slane %v508, %v515
        %518 = vst [vmem:[#allocation3 + $0x10] sm:$0x33] %v516
        %v519 = vld [vmem:[#allocation2 + $0x2] sm:$0x3f]
        %v520 = vld [vmem:[%s2] sm:$0xa]
        %v523 = vunpack.c.l.s4 1983009808
        %v524 = vunpack.c.0.s8 %v523
        %v525 = vlaneseq
        %v526 = vshrl.u32 %v525, 7
        %v527 = vsub.s32 %v524, %v526
        %v528 = vrot.slane %v520, %v527
        %v529 = vcombine.high %v528, %v528
        %v531 = vpack.i.b16 %v528, %v528
        %v533 = vlaneseq
        %v534 = vshrl.u32 %v533, 7
        %v535 = vsub.s32 1, %v534
        %v536 = vrot.slane %v531, %v535
        %v538 = vpack.i.b16 %v529, %v529
        %v540 = vlaneseq
        %v541 = vshrl.u32 %v540, 7
        %v542 = vsub.s32 1, %v541
        %v543 = vrot.slane %v538, %v542
        %v546 = vcombine.low %v536, %v543
        %v548 = vunpack.c.l.s4 1983009808
        %v549 = vunpack.c.0.s8 %v548
        %v550 = vlaneseq
        %v551 = vshrl.u32 %v550, 7
        %v552 = vsub.s32 %v549, %v551
        %v553 = vrot.slane %v546, %v552
        %554 = vrot.lane.b32.xlu0 %v553, 1
        %v555 = vpop.permute.xlu0 %554
        %v556 = vrot.slane %v555, 6
        %v557 = vsel %vm504, %v556, %v555
        %v559 = vmul.bf16 %v519, %v557
        %v561 = vcombine.low %v559, %v559
        %v563 = vunpack.c.l.s4 1983009808
        %v564 = vunpack.c.0.s8 %v563
        %v565 = vlaneseq
        %v566 = vshrl.u32 %v565, 7
        %v567 = vsub.s32 %v564, %v566
        %v568 = vrot.slane %v561, %v567
        %v570 = vunpack.c.l.s4 1983009808
        %v571 = vunpack.c.0.s8 %v570
        %v572 = vlaneseq
        %v573 = vshrl.u32 %v572, 7
        %v574 = vsub.s32 %v571, %v573
        %v575 = vrot.slane %v559, %v574
        %576 = vrot.lane.b32.xlu0 %v568, 127
        %v577 = vpop.permute.xlu0 %576
        %578 = vrot.lane.b32.xlu0 %v575, 127
        %v579 = vpop.permute.xlu0 %578
        %v580 = vrot.slane %v577, 4
        %v581 = vrot.slane %v579, 4
        %v582 = vsel %vm336, %v580, %v581
        %v583 = vsel %vm477, %v577, %v582
        %585 = vst [vmem:[#allocation3 + $0x10] sm:$0xcc] %v583
        %v586 = vld [vmem:[#allocation2 + $0x2] sm:$0x3f]
        %v587 = vld [vmem:[%s2] sm:$0x5]
        %v590 = vunpack.c.l.s4 1983009808
        %v591 = vunpack.c.0.s8 %v590
        %v592 = vlaneseq
        %v593 = vshrl.u32 %v592, 7
        %v594 = vsub.s32 %v591, %v593
        %v595 = vrot.slane %v587, %v594
        %v596 = vcombine.high %v595, %v595
        %v598 = vpack.i.b16 %v595, %v595
        %v600 = vlaneseq
        %v601 = vshrl.u32 %v600, 7
        %v602 = vsub.s32 0, %v601
        %v603 = vrot.slane %v598, %v602
        %v605 = vpack.i.b16 %v596, %v596
        %v607 = vlaneseq
        %v608 = vshrl.u32 %v607, 7
        %v609 = vsub.s32 0, %v608
        %v610 = vrot.slane %v605, %v609
        %v613 = vcombine.low %v603, %v610
        %v615 = vunpack.c.l.s4 1983009808
        %v616 = vunpack.c.0.s8 %v615
        %v617 = vlaneseq
        %v618 = vshrl.u32 %v617, 7
        %v619 = vsub.s32 %v616, %v618
        %v620 = vrot.slane %v613, %v619
        %621 = vrot.lane.b32.xlu0 %v620, 15
        %v622 = vpop.permute.xlu0 %621
        %v623 = vrot.slane %v622, 6
        %v624 = vsel %vm435, %v623, %v622
        %v626 = vmul.bf16 %v586, %v624
        %v628 = vcombine.high %v626, %v626
        %v630 = vunpack.c.l.s4 1983009808
        %v631 = vunpack.c.0.s8 %v630
        %v632 = vlaneseq
        %v633 = vshrl.u32 %v632, 7
        %v634 = vsub.s32 %v631, %v633
        %v635 = vrot.slane %v626, %v634
        %v637 = vunpack.c.l.s4 1983009808
        %v638 = vunpack.c.0.s8 %v637
        %v639 = vlaneseq
        %v640 = vshrl.u32 %v639, 7
        %v641 = vsub.s32 %v638, %v640
        %v642 = vrot.slane %v628, %v641
        %643 = vrot.lane.b32.xlu0 %v635, 113
        %v644 = vpop.permute.xlu0 %643
        %645 = vrot.lane.b32.xlu0 %v642, 113
        %v646 = vpop.permute.xlu0 %645
        %v647 = vrot.slane %v644, 4
        %v648 = vrot.slane %v646, 4
        %v649 = vsel %vm336, %v647, %v648
        %v650 = vsel %vm408, %v644, %v649
        %652 = vst [vmem:[#allocation3 + $0x18] sm:$0x33] %v650
        %v653 = vld [vmem:[#allocation2 + $0x2] sm:$0x3f]
        %v655 = vcombine.low %v653, %v653
        %v657 = vunpack.c.l.s4 1983009808
        %v658 = vunpack.c.0.s8 %v657
        %v659 = vlaneseq
        %v660 = vshrl.u32 %v659, 7
        %v661 = vsub.s32 %v658, %v660
        %v662 = vrot.slane %v655, %v661
        %v664 = vunpack.c.l.s4 1983009808
        %v665 = vunpack.c.0.s8 %v664
        %v666 = vlaneseq
        %v667 = vshrl.u32 %v666, 7
        %v668 = vsub.s32 %v665, %v667
        %v669 = vrot.slane %v653, %v668
        %670 = vrot.lane.b32.xlu0 %v662, 112
        %v671 = vpop.permute.xlu0 %670
        %672 = vrot.lane.b32.xlu0 %v669, 112
        %v673 = vpop.permute.xlu0 %672
        %v674 = vrot.slane %v671, 4
        %v675 = vrot.slane %v673, 4
        %v676 = vsel %vm336, %v674, %v675
        %vm677 = vcmask 916480
        %v678 = vsel %vm677, %v671, %v676
        %680 = vst [vmem:[#allocation3 + $0x18] sm:$0xcc] %v678
        %v681 = vld [vmem:[#allocation2 + $0x2] sm:$0x3f]
        %v682 = vld [vmem:[%s2] sm:$0xa]
        %v685 = vunpack.c.l.s4 1983009808
        %v686 = vunpack.c.0.s8 %v685
        %v687 = vlaneseq
        %v688 = vshrl.u32 %v687, 7
        %v689 = vsub.s32 %v686, %v688
        %v690 = vrot.slane %v682, %v689
        %v691 = vcombine.high %v690, %v690
        %v693 = vpack.i.b16 %v690, %v690
        %v695 = vlaneseq
        %v696 = vshrl.u32 %v695, 7
        %v697 = vsub.s32 1, %v696
        %v698 = vrot.slane %v693, %v697
        %v700 = vpack.i.b16 %v691, %v691
        %v702 = vlaneseq
        %v703 = vshrl.u32 %v702, 7
        %v704 = vsub.s32 1, %v703
        %v705 = vrot.slane %v700, %v704
        %v708 = vcombine.low %v698, %v705
        %v710 = vunpack.c.l.s4 1983009808
        %v711 = vunpack.c.0.s8 %v710
        %v712 = vlaneseq
        %v713 = vshrl.u32 %v712, 7
        %v714 = vsub.s32 %v711, %v713
        %v715 = vrot.slane %v708, %v714
        %716 = vrot.lane.b32.xlu0 %v715, 17
        %v717 = vpop.permute.xlu0 %716
        %v718 = vrot.slane %v717, 6
        %v719 = vsel %vm338, %v718, %v717
        %v721 = vmul.bf16 %v681, %v719
        %v723 = vcombine.high %v721, %v721
        %v725 = vunpack.c.l.s4 1983009808
        %v726 = vunpack.c.0.s8 %v725
        %v727 = vlaneseq
        %v728 = vshrl.u32 %v727, 7
        %v729 = vsub.s32 %v726, %v728
        %v730 = vrot.slane %v721, %v729
        %v732 = vunpack.c.l.s4 1983009808
        %v733 = vunpack.c.0.s8 %v732
        %v734 = vlaneseq
        %v735 = vshrl.u32 %v734, 7
        %v736 = vsub.s32 %v733, %v735
        %v737 = vrot.slane %v723, %v736
        %738 = vrot.lane.b32.xlu0 %v730, 111
        %v739 = vpop.permute.xlu0 %738
        %740 = vrot.lane.b32.xlu0 %v737, 111
        %v741 = vpop.permute.xlu0 %740
        %v742 = vrot.slane %v739, 4
        %v743 = vrot.slane %v741, 4
        %v744 = vsel %vm336, %v742, %v743
        %v745 = vsel %vm310, %v739, %v744
        %747 = vst [vmem:[#allocation3 + $0x20] sm:$0x33] %v745
        %v748 = vld [vmem:[%s1] sm:$0xf]
        %v749 = vld [vmem:[#allocation3] sm:$0xff]
        %v750 = vld [vmem:[#allocation3 + $0x8] sm:$0xff]
        %v751 = vld [vmem:[#allocation3 + $0x10] sm:$0xff]
        %v752 = vld [vmem:[#allocation3 + $0x18] sm:$0xff]
        %v753 = vld [vmem:[#allocation3 + $0x20] sm:$0x33]
        %v759 = vunpack.c.l.b16 %v749
        %v760 = vunpack.c.h.b16 %v749
        %v761 = vunpack.c.l.b16 %v750
        %v762 = vunpack.c.h.b16 %v750
        %v763 = vunpack.c.l.b16 %v751
        %v764 = vunpack.c.h.b16 %v751
        %v765 = vunpack.c.l.b16 %v752
        %v766 = vunpack.c.h.b16 %v752
        %v767 = vunpack.c.l.b16 %v753
        %v768 = vunpack.c.h.b16 %v753
        %v769 = vpack.c.b16 %v761, %v759
        %v770 = vpack.c.b16 %v762, %v760
        %v771 = vpack.c.b16 %v765, %v763
        %v772 = vpack.c.b16 %v766, %v764
        %v773 = vpack.c.b16 %v767, %v767
        %v774 = vpack.c.b16 %v768, %v768
        %vm779 = vcmask 293888
        %v781 = vsel %vm779, %v748, 0
        %vm783 = vcmask 1041408
        %v785 = vsel %vm783, %v773, 0
        %v788 = vsel %vm783, %v774, 0
        %790 = vmatprep.subr.bf16.mxu0 %v770
        %791 = vmatpush1.bf16.msra.mxu0 %v769
        %792 = vmatprep.subr.bf16.mxu0 %v772
        %793 = vmatpush1.bf16.msra.mxu0 %v771
        %794 = vmatprep.subr.bf16.mxu0 %v788
        %795 = vmatpush1.bf16.msra.mxu0 %v785
        %796 = vmatprep.subr.bf16.mxu0 0
        %797 = vmatpush1.bf16.msra.mxu0 0
        %798 = vmatprep.subr.bf16.mxu0 0
        %799 = vmatpush1.bf16.msra.mxu0 0
        %800 = vmatprep.subr.bf16.mxu0 0
        %801 = vmatpush1.bf16.msra.mxu0 0
        %802 = vmatprep.subr.bf16.mxu0 0
        %803 = vmatpush1.bf16.msra.mxu0 0
        %804 = vmatprep.subr.bf16.mxu0 0
        %805 = vmatpush1.bf16.msra.mxu0 0
        %806 = vmatprep.subr.bf16.mxu0 0
        %807 = vmatpush1.bf16.msra.mxu0 0
        %808 = vmatprep.subr.bf16.mxu0 0
        %809 = vmatpush1.bf16.msra.mxu0 0
        %810 = vmatprep.subr.bf16.mxu0 0
        %811 = vmatpush1.bf16.msra.mxu0 0
        %812 = vmatprep.subr.bf16.mxu0 0
        %813 = vmatpush1.bf16.msra.mxu0 0
        %814 = vmatprep.subr.bf16.mxu0 0
        %815 = vmatpush1.bf16.msra.mxu0 0
        %816 = vmatprep.subr.bf16.mxu0 0
        %817 = vmatpush1.bf16.msra.mxu0 0
        %818 = vmatprep.subr.bf16.mxu0 0
        %819 = vmatpush1.bf16.msra.mxu0 0
        %820 = vmatprep.subr.bf16.mxu0 0
        %821 = vmatpush1.bf16.msra.mxu0 0
        %822 = vmatprep.mubr.bf16.mxu0 0
        %823 = vmatmul.mubr.bf16.gmra.mrb[0].mxu0 %v781
        %v824 = vpop.f32.mrb[0].mxu0
        %v825 = vadd.f32 0.0, %v824
        %v826 = vpop.f32.mrb[0].mxu0
        %v827 = vadd.f32 0.0, %v826
        %v828 = vpop.f32.mrb[0].mxu0
        %v829 = vpop.f32.mrb[0].mxu0
        %830 = vdwg.mxu0
        %v831 = vld [vmem:[%s4] sm:$0xff]
        %833 = vset.pattern.permute.xlu0 0
        %834 = vperm.xlu0 %833, %v831
        %v835 = vpop.permute.xlu0 %834
        %v837 = vld [vmem:[%s5] sm:$0xff]
        %839 = vset.pattern.permute.xlu0 0
        %840 = vperm.xlu0 %839, %v837
        %v841 = vpop.permute.xlu0 %840
        %v843 = vld [vmem:[%s266] sm:$0x3]
        %v845 = vlaneseq
        %v846 = vshrl.u32 %v845, 7
        %v847 = vsub.s32 0, %v846
        %v848 = vrot.slane %v843, %v847
        %v849 = vlaneseq
        %v850 = vshrl.u32 %v849, 7
        %v851 = vsub.s32 1, %v850
        %v852 = vrot.slane %v843, %v851
        %v855 = vmul.f32 %v825, %v848
        %v856 = vmul.f32 %v827, %v852
        %v857 = vmul.f32 %v855, %v835
        %v858 = vmul.f32 %v856, %v835
        %v859 = vadd.f32 %v857, %v841
        %v860 = vadd.f32 %v858, %v841
        %v861 = vmul.f32 %v859, %v848
        %v862 = vmul.f32 %v860, %v852
        %v863 = vmax.f32 %v861, 0.0
        %v864 = vmax.f32 %v862, 0.0
        %865 = vst [vmem:[%s257] sm:$0xff] %v863
        %866 = vst [vmem:[%s257 + $0x8] sm:$0xff] %v864
        %s867 = sand.u32 %s164, 1
        %s868 = scalar_lea.sflag [#allocation5], %s867
        %s869 = sand.u32 %s164, 1
        %s870 = smul.addr %s869, 16
        %s871 = scalar_lea.vmem [#allocation4], %s870
        // Predicated region
        $region45: #{tpu_custom_call.1} parent=43 // pred_check
          %p872 = pneg %p174
        $region46: #{tpu_custom_call.1} parent=43 // pred_check_branch
          %874 = sbr.rel (%p872) target = $region48
        $region47: #{tpu_custom_call.1} parent=43 // pred_region
          %s876 = ssub.s32 256, 256
          %877 = vsyncadd %s868, %s876
          %s878 = smul.addr %s20, 2
          %s879 = smul.addr %s878, 128
          %s880 = scalar_lea.hbm %s6, %s879
          %s882 = sshll.u32 %s871, 4
          %s883 = int_to_ptr.vmem [resolvable:$true] %s882
          %885 = dma.vmem_to_hbm [thread:$0]  %s883, 256, %s880, %s868
        $region48: #{tpu_custom_call.1} parent=43 // pred_fallthru
          _
      $region44: #{tpu_custom_call.1} parent=5 // pred_fallthru
        _
      %p886 = scmp.le.s32.totalorder 2, %s15
      // Predicated region
      $region49: #{tpu_custom_call.1} parent=5 // pred_check
        %p887 = pneg %p886
      $region50: #{tpu_custom_call.1} parent=5 // pred_check_branch
        %889 = sbr.rel (%p887) target = $region52
      $region51: #{tpu_custom_call.1} parent=5 // pred_region
        %s890 = ssub.s32 %s15, 2
        // Predicated region
        $region53: #{tpu_custom_call.1} parent=51 // pred_check
          %p891 = pneg %p180
        $region54: #{tpu_custom_call.1} parent=51 // pred_check_branch
          %893 = sbr.rel (%p891) target = $region56
        $region55: #{tpu_custom_call.1} parent=51 // pred_region
          %s894 = sand.u32 %s165, 1
          %s895 = scalar_lea.sflag [#allocation5], %s894
          %s896 = sand.u32 %s165, 1
          %s897 = smul.addr %s896, 16
          %s898 = scalar_lea.vmem [#allocation4], %s897
          %899 = dma.done %s895, 256
        $region56: #{tpu_custom_call.1} parent=51 // pred_fallthru
          _
      $region52: #{tpu_custom_call.1} parent=5 // pred_fallthru
        _
    $region6: #{tpu_custom_call.1} parent=1 // loop_footer
      %s19 = sadd.s32 1, %s15
    $region7: #{tpu_custom_call.1} parent=1 // loop_footer_branch
      %14 = sbr.rel target = $region3
    $region8: #{tpu_custom_call.1} parent=1 // loop_exit
      _
    %900 = vsyncpa [#allocation5], 1
    %s901 = scalar_lea.sflag [#allocation5], 1
    %902 = vsyncpa %s901, 1

</llo_original>
